<compile_context>
chip_gen: v7x
topology: tpu7x:2x2x1
jax: 0.10.0
libtpu: 0.0.40
codegen_flags: <defaults>
</compile_context>

<pallas_src>
import functools

import jax
import jax.numpy as jnp
from jax.experimental import pallas as pl
from jax.experimental.pallas import tpu as pltpu

EPS = 1e-5
LANE = 128


def _bn_kernel(x_ref, g_ref, b_ref, o_ref,
               sum_acc, sq_acc, scale_sc, shift_sc,
               *, count, num_chunks):
    p = pl.program_id(0)   # phase: 0 = accumulate stats, 1 = normalize
    n = pl.program_id(1)   # batch index
    l = pl.program_id(2)   # length tile

    # ---- phase 0: streaming per-channel statistics -------------------------
    @pl.when((p == 0) & (n == 0) & (l == 0))
    def _init():
        sum_acc[...] = jnp.zeros_like(sum_acc)
        sq_acc[...] = jnp.zeros_like(sq_acc)

    @pl.when(p == 0)
    def _accumulate():
        s = sum_acc[...]
        q = sq_acc[...]
        for c in range(num_chunks):                         # static, small
            part = x_ref[0, :, c * LANE:(c + 1) * LANE]     # (C, 128) chunk
            s = s + part                                    # VPU adds only
            q = q + part * part
        sum_acc[...] = s
        sq_acc[...] = q

    @pl.when((p == 0)
             & (n == pl.num_programs(1) - 1)
             & (l == pl.num_programs(2) - 1))
    def _finalize():
        inv_count = 1.0 / count
        mean = jnp.sum(sum_acc[...], axis=1, keepdims=True) * inv_count  # (C,1)
        ex2 = jnp.sum(sq_acc[...], axis=1, keepdims=True) * inv_count    # (C,1)
        var = jnp.maximum(ex2 - mean * mean, 0.0)           # biased variance
        inv_std = jax.lax.rsqrt(var + EPS)
        scale = g_ref[...] * inv_std
        scale_sc[...] = scale
        shift_sc[...] = b_ref[...] - mean * scale

    # ---- phase 1: fused normalize + affine ----------------------------------
    @pl.when(p == 1)
    def _normalize():
        o_ref[0] = x_ref[0] * scale_sc[...] + shift_sc[...]


def batchnorm1d_pallas(x, gamma, beta):
    """x: (N, C, L) float32; gamma, beta: (C,) float32. Returns (N, C, L)."""
    N, C, L = x.shape
    count = float(N * L)                     # true element count per channel

    # Pad L to a lane multiple; zeros contribute nothing to sum / sum-of-squares
    # (we divide by the true count) and padded output columns are sliced off.
    Lp = ((L + LANE - 1) // LANE) * LANE
    if Lp != L:
        x = jnp.pad(x, ((0, 0), (0, 0), (0, Lp - L)))
    # Largest lane-dense tile (block <= 128 KiB at C=16 f32, well inside VMEM
    # with double buffering on every chip generation).
    TL = next(t for t in (2048, 1024, 512, 256, 128) if Lp % t == 0)
    num_l = Lp // TL
    num_chunks = TL // LANE

    g2d = gamma.reshape(C, 1).astype(jnp.float32)
    b2d = beta.reshape(C, 1).astype(jnp.float32)

    kernel = functools.partial(_bn_kernel, count=count, num_chunks=num_chunks)

    out = pl.pallas_call(
        kernel,
        out_shape=jax.ShapeDtypeStruct((N, C, Lp), jnp.float32),
        grid=(2, N, num_l),
        in_specs=[
            pl.BlockSpec((1, C, TL), lambda p, n, l: (n, 0, l)),
            pl.BlockSpec((C, 1), lambda p, n, l: (0, 0)),
            pl.BlockSpec((C, 1), lambda p, n, l: (0, 0)),
        ],
        # Phase 0 parks on block (0,0,0) (never written back until phase 1
        # fills it); phase 1 visits every block exactly once and writes it.
        out_specs=pl.BlockSpec((1, C, TL), lambda p, n, l: (p * n, 0, p * l)),
        scratch_shapes=[
            pltpu.VMEM((C, LANE), jnp.float32),   # partial per-lane sums
            pltpu.VMEM((C, LANE), jnp.float32),   # partial per-lane sum of squares
            pltpu.VMEM((C, 1), jnp.float32),      # scale = gamma * inv_std
            pltpu.VMEM((C, 1), jnp.float32),      # shift = beta - mean * scale
        ],
        compiler_params=pltpu.CompilerParams(
            dimension_semantics=("arbitrary", "arbitrary", "arbitrary")),
    )(x, g2d, b2d)

    if Lp != L:
        out = out[:, :, :L]
    return out


def _reference(x, gamma, beta):
    mean = jnp.mean(x, axis=(0, 2), keepdims=True)
    var = jnp.mean((x - mean) ** 2, axis=(0, 2), keepdims=True)
    return (x - mean) / jnp.sqrt(var + EPS) * gamma.reshape(1, -1, 1) \
        + beta.reshape(1, -1, 1)


if __name__ == "__main__":
    key = jax.random.PRNGKey(0)
    C = 16                                        # BatchNorm1d(16)
    gamma = jnp.ones((C,), dtype=jnp.float32)     # default weight = 1
    beta = jnp.zeros((C,), dtype=jnp.float32)     # default bias = 0

    # small lane-dense case + a small ragged case exercising the pad path
    for (N, L) in ((2, 256), (2, 8)):
        kx = jax.random.fold_in(key, N * 1000 + L)
        x = 1.7 * jax.random.normal(kx, (N, C, L), dtype=jnp.float32) + 0.3

        out = jax.block_until_ready(batchnorm1d_pallas(x, gamma, beta))
        ref = _reference(x, gamma, beta)

        assert out.shape == (N, C, L)
        assert jnp.allclose(out, ref, atol=1e-4, rtol=1e-4), \
            float(jnp.max(jnp.abs(out - ref)))

    print("KERNEL_OK")
</pallas_src>

<mosaic_0001>
module attributes {stable_mosaic.version = 11 : i64} {
  func.func @_bn_kernel(%arg0: i32, %arg1: i32, %arg2: i32, %arg3: memref<1x16x256xf32, #tpu.memory_space<vmem>>, %arg4: memref<16x1xf32, #tpu.memory_space<vmem>>, %arg5: memref<16x1xf32, #tpu.memory_space<vmem>>, %arg6: memref<1x16x256xf32, #tpu.memory_space<vmem>>, %arg7: memref<16x128xf32, #tpu.memory_space<vmem>>, %arg8: memref<16x128xf32, #tpu.memory_space<vmem>>, %arg9: memref<16x1xf32, #tpu.memory_space<vmem>>, %arg10: memref<16x1xf32, #tpu.memory_space<vmem>>) attributes {dimension_semantics = [#tpu.dimension_semantics<arbitrary>, #tpu.dimension_semantics<arbitrary>, #tpu.dimension_semantics<arbitrary>], iteration_bounds = array<i64: 2, 2, 1>, scalar_prefetch = 0 : i64, scratch_operands = 4 : i64, tpu.core_type = #tpu.core_type<tc>, window_params = [{transform_indices = @transform_0, window_bounds = array<i64: 1, 16, 256>}, {pipeline_mode = #tpu.pipeline_mode<synchronous>, transform_indices = @transform_1, window_bounds = array<i64: 16, 1>}, {pipeline_mode = #tpu.pipeline_mode<synchronous>, transform_indices = @transform_2, window_bounds = array<i64: 16, 1>}, {transform_indices = @transform_3, window_bounds = array<i64: 1, 16, 256>}]} {
    %c0_i32 = arith.constant 0 : i32
    %0 = arith.cmpi eq, %arg0, %c0_i32 : i32
    %c0_i32_0 = arith.constant 0 : i32
    %1 = arith.cmpi eq, %arg1, %c0_i32_0 : i32
    %2 = arith.andi %0, %1 : i1
    %c0_i32_1 = arith.constant 0 : i32
    %3 = arith.cmpi eq, %arg2, %c0_i32_1 : i32
    %4 = arith.andi %2, %3 : i1
    %5 = arith.extui %4 : i1 to i32
    %c0_i32_2 = arith.constant 0 : i32
    %6 = arith.cmpi ne, %5, %c0_i32_2 : i32
    scf.if %6 {
      %cst = arith.constant 0.000000e+00 : f32
      %20 = vector.broadcast %cst : f32 to vector<16x128xf32>
      %c0 = arith.constant 0 : index
      %c0_10 = arith.constant 0 : index
      %21 = vector.load %arg7[%c0, %c0_10] : memref<16x128xf32, #tpu.memory_space<vmem>>, vector<16x128xf32>
      tpu.vector_store %arg7[%c0, %c0_10], %20 {strides = array<i32>} : memref<16x128xf32, #tpu.memory_space<vmem>>, vector<16x128xf32>,
      %cst_11 = arith.constant 0.000000e+00 : f32
      %22 = vector.broadcast %cst_11 : f32 to vector<16x128xf32>
      %c0_12 = arith.constant 0 : index
      %c0_13 = arith.constant 0 : index
      %23 = vector.load %arg8[%c0_12, %c0_13] : memref<16x128xf32, #tpu.memory_space<vmem>>, vector<16x128xf32>
      tpu.vector_store %arg8[%c0_12, %c0_13], %22 {strides = array<i32>} : memref<16x128xf32, #tpu.memory_space<vmem>>, vector<16x128xf32>,
    } else {
    }
    %c0_i32_3 = arith.constant 0 : i32
    %7 = arith.cmpi eq, %arg0, %c0_i32_3 : i32
    %8 = arith.extui %7 : i1 to i32
    %c0_i32_4 = arith.constant 0 : i32
    %9 = arith.cmpi ne, %8, %c0_i32_4 : i32
    scf.if %9 {
      %c0 = arith.constant 0 : index
      %c0_10 = arith.constant 0 : index
      %20 = vector.load %arg7[%c0, %c0_10] : memref<16x128xf32, #tpu.memory_space<vmem>>, vector<16x128xf32>
      %c0_11 = arith.constant 0 : index
      %c0_12 = arith.constant 0 : index
      %21 = vector.load %arg8[%c0_11, %c0_12] : memref<16x128xf32, #tpu.memory_space<vmem>>, vector<16x128xf32>
      %c0_13 = arith.constant 0 : index
      %c0_14 = arith.constant 0 : index
      %c0_15 = arith.constant 0 : index
      %22 = vector.load %arg3[%c0_13, %c0_14, %c0_15] : memref<1x16x256xf32, #tpu.memory_space<vmem>>, vector<1x16x128xf32>
      %23 = vector.shape_cast %22 : vector<1x16x128xf32> to vector<16x128xf32>
      %24 = arith.addf %20, %23 : vector<16x128xf32>
      %25 = arith.mulf %23, %23 : vector<16x128xf32>
      %26 = arith.addf %21, %25 : vector<16x128xf32>
      %c0_16 = arith.constant 0 : index
      %c0_17 = arith.constant 0 : index
      %c128 = arith.constant 128 : index
      %27 = vector.load %arg3[%c0_16, %c0_17, %c128] : memref<1x16x256xf32, #tpu.memory_space<vmem>>, vector<1x16x128xf32>
      %28 = vector.shape_cast %27 : vector<1x16x128xf32> to vector<16x128xf32>
      %29 = arith.addf %24, %28 : vector<16x128xf32>
      %30 = arith.mulf %28, %28 : vector<16x128xf32>
      %31 = arith.addf %26, %30 : vector<16x128xf32>
      %c0_18 = arith.constant 0 : index
      %c0_19 = arith.constant 0 : index
      %32 = vector.load %arg7[%c0_18, %c0_19] : memref<16x128xf32, #tpu.memory_space<vmem>>, vector<16x128xf32>
      tpu.vector_store %arg7[%c0_18, %c0_19], %29 {strides = array<i32>} : memref<16x128xf32, #tpu.memory_space<vmem>>, vector<16x128xf32>,
      %c0_20 = arith.constant 0 : index
      %c0_21 = arith.constant 0 : index
      %33 = vector.load %arg8[%c0_20, %c0_21] : memref<16x128xf32, #tpu.memory_space<vmem>>, vector<16x128xf32>
      tpu.vector_store %arg8[%c0_20, %c0_21], %31 {strides = array<i32>} : memref<16x128xf32, #tpu.memory_space<vmem>>, vector<16x128xf32>,
    } else {
    }
    %c0_i32_5 = arith.constant 0 : i32
    %10 = arith.cmpi eq, %arg0, %c0_i32_5 : i32
    %c1_i32 = arith.constant 1 : i32
    %11 = arith.cmpi eq, %arg1, %c1_i32 : i32
    %12 = arith.andi %10, %11 : i1
    %c0_i32_6 = arith.constant 0 : i32
    %13 = arith.cmpi eq, %arg2, %c0_i32_6 : i32
    %14 = arith.andi %12, %13 : i1
    %15 = arith.extui %14 : i1 to i32
    %c0_i32_7 = arith.constant 0 : i32
    %16 = arith.cmpi ne, %15, %c0_i32_7 : i32
    scf.if %16 {
      %c0 = arith.constant 0 : index
      %c0_10 = arith.constant 0 : index
      %20 = vector.load %arg7[%c0, %c0_10] : memref<16x128xf32, #tpu.memory_space<vmem>>, vector<16x128xf32>
      %cst = arith.constant dense<0.000000e+00> : vector<16xf32>
      %21 = vector.multi_reduction <add>, %20, %cst [1] : vector<16x128xf32> to vector<16xf32>
      %22 = vector.shape_cast %21 : vector<16xf32> to vector<16x1xf32>
      %cst_11 = arith.constant 0.001953125 : f32
      %23 = vector.broadcast %cst_11 : f32 to vector<16x1xf32>
      %24 = arith.mulf %22, %23 : vector<16x1xf32>
      %c0_12 = arith.constant 0 : index
      %c0_13 = arith.constant 0 : index
      %25 = vector.load %arg8[%c0_12, %c0_13] : memref<16x128xf32, #tpu.memory_space<vmem>>, vector<16x128xf32>
      %cst_14 = arith.constant dense<0.000000e+00> : vector<16xf32>
      %26 = vector.multi_reduction <add>, %25, %cst_14 [1] : vector<16x128xf32> to vector<16xf32>
      %27 = vector.shape_cast %26 : vector<16xf32> to vector<16x1xf32>
      %cst_15 = arith.constant 0.001953125 : f32
      %28 = vector.broadcast %cst_15 : f32 to vector<16x1xf32>
      %29 = arith.mulf %27, %28 : vector<16x1xf32>
      %30 = arith.mulf %24, %24 : vector<16x1xf32>
      %31 = arith.subf %29, %30 : vector<16x1xf32>
      %cst_16 = arith.constant 0.000000e+00 : f32
      %32 = vector.broadcast %cst_16 : f32 to vector<16x1xf32>
      %33 = arith.maximumf %31, %32 : vector<16x1xf32>
      %cst_17 = arith.constant 9.99999974E-6 : f32
      %34 = vector.broadcast %cst_17 : f32 to vector<16x1xf32>
      %35 = arith.addf %33, %34 : vector<16x1xf32>
      %36 = math.rsqrt %35 : vector<16x1xf32>
      %c0_18 = arith.constant 0 : index
      %c0_19 = arith.constant 0 : index
      %37 = vector.load %arg4[%c0_18, %c0_19] : memref<16x1xf32, #tpu.memory_space<vmem>>, vector<16x1xf32>
      %38 = arith.mulf %37, %36 : vector<16x1xf32>
      %c0_20 = arith.constant 0 : index
      %c0_21 = arith.constant 0 : index
      %39 = vector.load %arg9[%c0_20, %c0_21] : memref<16x1xf32, #tpu.memory_space<vmem>>, vector<16x1xf32>
      tpu.vector_store %arg9[%c0_20, %c0_21], %38 {strides = array<i32>} : memref<16x1xf32, #tpu.memory_space<vmem>>, vector<16x1xf32>,
      %c0_22 = arith.constant 0 : index
      %c0_23 = arith.constant 0 : index
      %40 = vector.load %arg5[%c0_22, %c0_23] : memref<16x1xf32, #tpu.memory_space<vmem>>, vector<16x1xf32>
      %41 = arith.mulf %24, %38 : vector<16x1xf32>
      %42 = arith.subf %40, %41 : vector<16x1xf32>
      %c0_24 = arith.constant 0 : index
      %c0_25 = arith.constant 0 : index
      %43 = vector.load %arg10[%c0_24, %c0_25] : memref<16x1xf32, #tpu.memory_space<vmem>>, vector<16x1xf32>
      tpu.vector_store %arg10[%c0_24, %c0_25], %42 {strides = array<i32>} : memref<16x1xf32, #tpu.memory_space<vmem>>, vector<16x1xf32>,
    } else {
    }
    %c1_i32_8 = arith.constant 1 : i32
    %17 = arith.cmpi eq, %arg0, %c1_i32_8 : i32
    %18 = arith.extui %17 : i1 to i32
    %c0_i32_9 = arith.constant 0 : i32
    %19 = arith.cmpi ne, %18, %c0_i32_9 : i32
    scf.if %19 {
      %c0 = arith.constant 0 : index
      %c0_10 = arith.constant 0 : index
      %c0_11 = arith.constant 0 : index
      %20 = vector.load %arg3[%c0, %c0_10, %c0_11] : memref<1x16x256xf32, #tpu.memory_space<vmem>>, vector<1x16x256xf32>
      %21 = vector.shape_cast %20 : vector<1x16x256xf32> to vector<16x256xf32>
      %c0_12 = arith.constant 0 : index
      %c0_13 = arith.constant 0 : index
      %22 = vector.load %arg9[%c0_12, %c0_13] : memref<16x1xf32, #tpu.memory_space<vmem>>, vector<16x1xf32>
      %23 = vector.broadcast %22 : vector<16x1xf32> to vector<16x256xf32>
      %24 = arith.mulf %21, %23 : vector<16x256xf32>
      %c0_14 = arith.constant 0 : index
      %c0_15 = arith.constant 0 : index
      %25 = vector.load %arg10[%c0_14, %c0_15] : memref<16x1xf32, #tpu.memory_space<vmem>>, vector<16x1xf32>
      %26 = vector.broadcast %25 : vector<16x1xf32> to vector<16x256xf32>
      %27 = arith.addf %24, %26 : vector<16x256xf32>
      %c0_16 = arith.constant 0 : index
      %c0_17 = arith.constant 0 : index
      %c0_18 = arith.constant 0 : index
      %28 = vector.load %arg6[%c0_16, %c0_17, %c0_18] : memref<1x16x256xf32, #tpu.memory_space<vmem>>, vector<1x16x256xf32>
      %29 = vector.shape_cast %28 : vector<1x16x256xf32> to vector<16x256xf32>
      %30 = vector.shape_cast %27 : vector<16x256xf32> to vector<1x16x256xf32>
      tpu.vector_store %arg6[%c0_16, %c0_17, %c0_18], %30 {strides = array<i32>} : memref<1x16x256xf32, #tpu.memory_space<vmem>>, vector<1x16x256xf32>,
    } else {
    }
    return
  }
  func.func @transform_0(%arg0: i32, %arg1: i32, %arg2: i32) -> (i32, i32, i32) {
    %c0_i32 = arith.constant 0 : i32
    %c0_i32_0 = arith.constant 0 : i32
    return %arg1, %c0_i32, %arg2 : i32, i32, i32
  }
  func.func @transform_1(%arg0: i32, %arg1: i32, %arg2: i32) -> (i32, i32) {
    %c0_i32 = arith.constant 0 : i32
    %c0_i32_0 = arith.constant 0 : i32
    %c0_i32_1 = arith.constant 0 : i32
    return %c0_i32, %c0_i32_0 : i32, i32
  }
  func.func @transform_2(%arg0: i32, %arg1: i32, %arg2: i32) -> (i32, i32) {
    %c0_i32 = arith.constant 0 : i32
    %c0_i32_0 = arith.constant 0 : i32
    %c0_i32_1 = arith.constant 0 : i32
    return %c0_i32, %c0_i32_0 : i32, i32
  }
  func.func @transform_3(%arg0: i32, %arg1: i32, %arg2: i32) -> (i32, i32, i32) {
    %0 = arith.muli %arg0, %arg1 : i32
    %1 = arith.muli %arg0, %arg2 : i32
    %c0_i32 = arith.constant 0 : i32
    %c0_i32_0 = arith.constant 0 : i32
    return %0, %c0_i32, %1 : i32, i32, i32
  }
}

</mosaic_0001>

<llo_original>
// kernel: tpu_custom_call.1
$region0: #{tpu_custom_call.1}
  #allocation0 [shape = 'u32[]', space=smem, size = 0x4, offset = 0x4, fixed_abs, tag = 'smem constant byte address 0x4 - core index']
  #allocation1 [shape = 'u32[144,128]{1,0:T(1,128)}', space=vmem, size = 0x12000, scoped, tag = 'internal scratch']
  #allocation2 [shape = 'f32[16,128]{1,0:T(8,128)}', space=vmem, size = 0x2000, scoped, tag = 'scratch operand']
  #allocation3 [shape = 'f32[16,128]{1,0:T(8,128)}', space=vmem, size = 0x2000, scoped, tag = 'scratch operand']
  #allocation4 [shape = 'f32[16,1]{1,0:T(8,128)}', space=vmem, size = 0x2000, scoped, tag = 'scratch operand']
  #allocation5 [shape = 'f32[16,1]{1,0:T(8,128)}', space=vmem, size = 0x2000, scoped, tag = 'scratch operand']
  %s0 = inlined_call_operand.hbm [shape: f32[2,16,256], index: 0, kind: input, shape index: {}]
  %s1 = inlined_call_operand.vmem [shape: f32[16,1], index: 1, kind: input, shape index: {}]
  %s2 = inlined_call_operand.vmem [shape: f32[16,1], index: 2, kind: input, shape index: {}]
  %s3 = inlined_call_operand.hbm [shape: f32[2,16,256], index: 3, kind: output, shape index: {}]
  %s4 = sld [smem:[#allocation0]]
  $region65: #{tpu_custom_call.1} parent=0
    _
  %s6 = ssub.s32 1, %s4
  %s7 = scalar_select 0, %s6, %s4
  $region1: #{tpu_custom_call.1} parent=0
    #allocation6 [shape = 'u8[32768]{0}', space=vmem, size = 0x8000, scoped, tag = 'input window, operand 0']
    #allocation7 [shape = 's32[2]{0}', space=sflag, size = 0x8, scoped, tag = 'scoped memory for tpu_custom_call.1']
    #allocation8 [shape = 's32[2]{0}', space=sflag, size = 0x8, scoped, tag = 'scoped memory for tpu_custom_call.1']
    #allocation9 [shape = 'u8[32768]{0}', space=vmem, size = 0x8000, scoped, tag = 'output window, operand 0']
    %8 = vsyncpa [#allocation7], 0
    %s9 = scalar_lea.sflag [#allocation7], 1
    %10 = vsyncpa %s9, 0
    %11 = vsyncpa [#allocation8], 0
    %s12 = scalar_lea.sflag [#allocation8], 1
    %13 = vsyncpa %s12, 0
    loop: start=0, step=1, limit=6
    $region2: #{tpu_custom_call.1} parent=1 // loop_pre_header
      _
    $region3: #{tpu_custom_call.1} parent=1 // loop_header
      %s15 = sphi 0, %s19
      %p16 = scmp.ge.s32.totalorder %s15, 6
      %s22 = sphi 0, %s41
      %s23 = sphi 0, %s37
      %s24 = sphi 0, %s33
      %s25 = sphi 0, %s22
      %s26 = sphi 0, %s23
      %s27 = sphi 0, %s24
      %s28 = sphi 0, %s25
      %s29 = sphi 0, %s26
      %s30 = sphi 0, %s27
      %s46 = sphi 0, %s48
      %s49 = sphi 0, %s46
      %s50 = sphi 0, %s49
      %s66 = sphi 0, %s50
      %s70 = sphi 0, %s70
      %s72 = sphi 0, %s70
      %s73 = sphi 0, %s72
      %s87 = sphi 0, %s73
      %s91 = sphi 0, %s91
      %s93 = sphi 0, %s91
      %s94 = sphi 0, %s93
      %s108 = sphi 0, %s94
      %s120 = sphi 0, %s122
      %s123 = sphi 0, %s120
      %s124 = sphi 0, %s123
      %s140 = sphi 0, %s124
    $region4: #{tpu_custom_call.1} parent=1 // loop_header_branch
      %18 = sbr.rel (%p16) target = $region8
    $region5: #{tpu_custom_call.1} parent=1 // loop_body
      %s20 = ssub.s32 %s15, 1
      %s21 = ssub.s32 %s15, 2
      %s31 = sadd.s32 1, %s24
      %p32 = scmp.ge.s32.totalorder %s31, 1
      %s33 = scalar_select %p32, 0, %s31
      %s34 = sadd.s32 1, %s23
      %s35 = scalar_select %p32, %s34, %s23
      %p36 = scmp.ge.s32.totalorder %s35, 2
      %s37 = scalar_select %p36, 0, %s35
      %s38 = sadd.s32 1, %s22
      %s39 = scalar_select %p36, %s38, %s22
      %p40 = scmp.ge.s32.totalorder %s39, 2
      %s41 = scalar_select %p40, 0, %s39
      %s42 = ssub.s32 %s23, %s37
      %s43 = ssub.s32 %s24, %s33
      %s44 = sor.u32 %s42, %s43
      %p45 = scmp.eq.s32.totalorder %s44, 0
      %s47 = sadd.s32 %s46, 1
      %s48 = scalar_select %p45, %s46, %s47
      %p51 = pneg %p45
      %p52 = scmp.eq.s32.totalorder %s15, 3
      %p53 = por %p51, %p52
      %p54 = scmp.ne.s32.totalorder %s46, %s49
      %p55 = scmp.eq.s32.totalorder %s15, 0
      %p56 = por %p54, %p55
      %p57 = scmp.ne.s32.totalorder %s46, %s49
      %p58 = scmp.eq.s32.totalorder %s20, 3
      %p59 = por %p57, %p58
      %p60 = scmp.ne.s32.totalorder %s49, %s50
      %p61 = scmp.eq.s32.totalorder %s20, 0
      %p62 = por %p60, %p61
      %p63 = scmp.ne.s32.totalorder %s49, %s50
      %p64 = scmp.eq.s32.totalorder %s21, 3
      %p65 = por %p63, %p64
      %p67 = scmp.ne.s32.totalorder %s50, %s66
      %p68 = scmp.eq.s32.totalorder %s21, 0
      %p69 = por %p67, %p68
      %s71 = sadd.s32 %s70, 1
      %p74 = scmp.eq.s32.totalorder %s15, 3
      %p75 = scmp.ne.s32.totalorder %s70, %s72
      %p76 = scmp.eq.s32.totalorder %s15, 0
      %p77 = por %p75, %p76
      %p78 = scmp.ne.s32.totalorder %s70, %s72
      %p79 = scmp.eq.s32.totalorder %s20, 3
      %p80 = por %p78, %p79
      %p81 = scmp.ne.s32.totalorder %s72, %s73
      %p82 = scmp.eq.s32.totalorder %s20, 0
      %p83 = por %p81, %p82
      %p84 = scmp.ne.s32.totalorder %s72, %s73
      %p85 = scmp.eq.s32.totalorder %s21, 3
      %p86 = por %p84, %p85
      %p88 = scmp.ne.s32.totalorder %s73, %s87
      %p89 = scmp.eq.s32.totalorder %s21, 0
      %p90 = por %p88, %p89
      %s92 = sadd.s32 %s91, 1
      %p95 = scmp.eq.s32.totalorder %s15, 3
      %p96 = scmp.ne.s32.totalorder %s91, %s93
      %p97 = scmp.eq.s32.totalorder %s15, 0
      %p98 = por %p96, %p97
      %p99 = scmp.ne.s32.totalorder %s91, %s93
      %p100 = scmp.eq.s32.totalorder %s20, 3
      %p101 = por %p99, %p100
      %p102 = scmp.ne.s32.totalorder %s93, %s94
      %p103 = scmp.eq.s32.totalorder %s20, 0
      %p104 = por %p102, %p103
      %p105 = scmp.ne.s32.totalorder %s93, %s94
      %p106 = scmp.eq.s32.totalorder %s21, 3
      %p107 = por %p105, %p106
      %p109 = scmp.ne.s32.totalorder %s94, %s108
      %p110 = scmp.eq.s32.totalorder %s21, 0
      %p111 = por %p109, %p110
      %s112 = smul.u32 %s22, %s23
      %s113 = smul.u32 %s22, %s24
      %s114 = smul.u32 %s41, %s37
      %s115 = smul.u32 %s41, %s33
      %s116 = ssub.s32 %s112, %s114
      %s117 = ssub.s32 %s113, %s115
      %s118 = sor.u32 %s116, %s117
      %p119 = scmp.eq.s32.totalorder %s118, 0
      %s121 = sadd.s32 %s120, 1
      %s122 = scalar_select %p119, %s120, %s121
      %p125 = pneg %p119
      %p126 = scmp.eq.s32.totalorder %s15, 3
      %p127 = por %p125, %p126
      %p128 = scmp.ne.s32.totalorder %s120, %s123
      %p129 = scmp.eq.s32.totalorder %s15, 0
      %p130 = por %p128, %p129
      %p131 = scmp.ne.s32.totalorder %s120, %s123
      %p132 = scmp.eq.s32.totalorder %s20, 3
      %p133 = por %p131, %p132
      %p134 = scmp.ne.s32.totalorder %s123, %s124
      %p135 = scmp.eq.s32.totalorder %s20, 0
      %p136 = por %p134, %p135
      %p137 = scmp.ne.s32.totalorder %s123, %s124
      %p138 = scmp.eq.s32.totalorder %s21, 3
      %p139 = por %p137, %p138
      %p141 = scmp.ne.s32.totalorder %s124, %s140
      %p142 = scmp.eq.s32.totalorder %s21, 0
      %p143 = por %p141, %p142
      %p144 = scmp.le.s32.totalorder 1, %s15
      %p145 = scmp.lt.s32.totalorder %s15, 5
      %p146 = pnand %p144, %p145
      %p147 = pneg %p146
      // Predicated region
      $region9: #{tpu_custom_call.1} parent=5 // pred_check
        _
      $region10: #{tpu_custom_call.1} parent=5 // pred_check_branch
        %149 = sbr.rel (%p146) target = $region12
      $region11: #{tpu_custom_call.1} parent=5 // pred_region
        %s150 = ssub.s32 %s15, 1
        // Predicated region
        $region13: #{tpu_custom_call.1} parent=11 // pred_check
          %p151 = pneg %p83
        $region14: #{tpu_custom_call.1} parent=11 // pred_check_branch
          %153 = sbr.rel (%p151) target = $region16
        $region15: #{tpu_custom_call.1} parent=11 // pred_region
          _
        $region16: #{tpu_custom_call.1} parent=11 // pred_fallthru
          _
        // Predicated region
        $region17: #{tpu_custom_call.1} parent=11 // pred_check
          %p154 = pneg %p104
        $region18: #{tpu_custom_call.1} parent=11 // pred_check_branch
          %156 = sbr.rel (%p154) target = $region20
        $region19: #{tpu_custom_call.1} parent=11 // pred_region
          _
        $region20: #{tpu_custom_call.1} parent=11 // pred_fallthru
          _
      $region12: #{tpu_custom_call.1} parent=5 // pred_fallthru
        _
      %p157 = scmp.lt.s32.totalorder %s15, 4
      // Predicated region
      $region21: #{tpu_custom_call.1} parent=5 // pred_check
        %p158 = pneg %p157
      $region22: #{tpu_custom_call.1} parent=5 // pred_check_branch
        %160 = sbr.rel (%p158) target = $region24
      $region23: #{tpu_custom_call.1} parent=5 // pred_region
        // Predicated region
        $region25: #{tpu_custom_call.1} parent=23 // pred_check
          %p161 = pneg %p56
        $region26: #{tpu_custom_call.1} parent=23 // pred_check_branch
          %163 = sbr.rel (%p161) target = $region28
        $region27: #{tpu_custom_call.1} parent=23 // pred_region
          %s164 = sand.u32 %s46, 1
          %s165 = scalar_lea.sflag [#allocation7], %s164
          %s166 = sand.u32 %s46, 1
          %s167 = smul.addr %s166, 32
          %s168 = scalar_lea.vmem [#allocation6], %s167
          %s169 = smul.u32 2, %s24
          %s171 = ssub.s32 512, 512
          %172 = vsyncadd %s165, %s171
          %s173 = smul.addr %s23, 4
          %s174 = sadd.s32 %s169, %s173
          %s175 = smul.addr %s174, 128
          %s176 = scalar_lea.hbm %s0, %s175
          %s177 = sshll.u32 %s168, 4
          %s178 = int_to_ptr.vmem [resolvable:$true] %s177
          %183 = dma.hbm_to_vmem [thread:$0]  %s176, 512, %s178, %s165, 256, 256, 16
        $region28: #{tpu_custom_call.1} parent=23 // pred_fallthru
          _
      $region24: #{tpu_custom_call.1} parent=5 // pred_fallthru
        _
      %p184 = scmp.le.s32.totalorder 1, %s15
      %p185 = scmp.lt.s32.totalorder %s15, 5
      %p186 = pnand %p184, %p185
      %p187 = pneg %p186
      // Predicated region
      $region29: #{tpu_custom_call.1} parent=5 // pred_check
        _
      $region30: #{tpu_custom_call.1} parent=5 // pred_check_branch
        %189 = sbr.rel (%p186) target = $region32
      $region31: #{tpu_custom_call.1} parent=5 // pred_region
        %s190 = ssub.s32 %s15, 1
        %s191 = sand.u32 %s49, 1
        %s192 = scalar_lea.sflag [#allocation7], %s191
        %s193 = sand.u32 %s49, 1
        %s194 = smul.addr %s193, 32
        %s195 = scalar_lea.vmem [#allocation6], %s194
        // Predicated region
        $region33: #{tpu_custom_call.1} parent=31 // pred_check
          %p196 = pneg %p62
        $region34: #{tpu_custom_call.1} parent=31 // pred_check_branch
          %198 = sbr.rel (%p196) target = $region36
        $region35: #{tpu_custom_call.1} parent=31 // pred_region
          %199 = dma.done %s192, 512
        $region36: #{tpu_custom_call.1} parent=31 // pred_fallthru
          _
        %s200 = sand.u32 %s49, 1
        %s201 = scalar_lea.sflag [#allocation7], %s200
        %s202 = sand.u32 %s49, 1
        %s203 = smul.addr %s202, 32
        %s204 = scalar_lea.vmem [#allocation6], %s203
        %p205 = pneg %p62
        %p206 = pneg %p59
        %p207 = pneg %p83
        %p208 = pneg %p80
        %p209 = pneg %p104
        %p210 = pneg %p101
        %p211 = pneg %p136
        %p212 = pneg %p133
        %s213 = sand.u32 %s123, 1
        %s214 = scalar_lea.sflag [#allocation8], %s213
        %s215 = sand.u32 %s123, 1
        %s216 = smul.addr %s215, 32
        %s217 = scalar_lea.vmem [#allocation9], %s216
        %s218 = smul.u32 2, %s27
        %s219 = smul.u32 %s25, %s26
        %s220 = smul.u32 %s25, %s27
        %s221 = smul.u32 2, %s220
        %p222 = scmp.eq.s32.totalorder %s25, 0
        %p223 = scmp.eq.s32.totalorder %s26, 0
        %p224 = pnand %p222, %p223
        %p225 = pneg %p224
        %p226 = scmp.eq.s32.totalorder %s27, 0
        %p227 = pnand %p225, %p226
        %p228 = pneg %p227
        // Predicated region
        $region37: #{tpu_custom_call.1} parent=31 // pred_check
          _
        $region38: #{tpu_custom_call.1} parent=31 // pred_check_branch
          %230 = sbr.rel (%p227) target = $region40
        $region39: #{tpu_custom_call.1} parent=31 // pred_region
          %231 = vst [vmem:[#allocation2] sm:$0xff] 0.0
          %232 = vst [vmem:[#allocation2 + $0x8] sm:$0xff] 0.0
          %233 = vst [vmem:[#allocation3] sm:$0xff] 0.0
          %234 = vst [vmem:[#allocation3 + $0x8] sm:$0xff] 0.0
        $region40: #{tpu_custom_call.1} parent=31 // pred_fallthru
          _
        // Predicated region
        $region41: #{tpu_custom_call.1} parent=31 // pred_check
          %p235 = pneg %p222
        $region42: #{tpu_custom_call.1} parent=31 // pred_check_branch
          %237 = sbr.rel (%p235) target = $region44
        $region43: #{tpu_custom_call.1} parent=31 // pred_region
          %v238 = vld [vmem:[#allocation2] sm:$0xff]
          %v239 = vld [vmem:[#allocation2 + $0x8] sm:$0xff]
          %v240 = vld [vmem:[#allocation3] sm:$0xff]
          %v241 = vld [vmem:[#allocation3 + $0x8] sm:$0xff]
          %v242 = vld [vmem:[%s195] sm:$0xff]
          %v243 = vld [vmem:[%s195 + $0x10] sm:$0xff]
          %v244 = vadd.f32 %v238, %v242
          %v245 = vadd.f32 %v239, %v243
          %v246 = vmul.f32 %v242, %v242
          %v247 = vmul.f32 %v243, %v243
          %v248 = vadd.f32 %v240, %v246
          %v249 = vadd.f32 %v241, %v247
          %v250 = vld [vmem:[%s195 + $0x8] sm:$0xff]
          %v251 = vld [vmem:[%s195 + $0x18] sm:$0xff]
          %v252 = vadd.f32 %v244, %v250
          %v253 = vadd.f32 %v245, %v251
          %v254 = vmul.f32 %v250, %v250
          %v255 = vmul.f32 %v251, %v251
          %v256 = vadd.f32 %v248, %v254
          %v257 = vadd.f32 %v249, %v255
          %258 = vst [vmem:[#allocation2] sm:$0xff] %v252
          %259 = vst [vmem:[#allocation2 + $0x8] sm:$0xff] %v253
          %260 = vst [vmem:[#allocation3] sm:$0xff] %v256
          %261 = vst [vmem:[#allocation3 + $0x8] sm:$0xff] %v257
        $region44: #{tpu_custom_call.1} parent=31 // pred_fallthru
          _
        %p262 = scmp.eq.s32.totalorder %s26, 1
        %p263 = pnand %p222, %p262
        %p264 = pneg %p263
        %p265 = pnand %p264, %p226
        %p266 = pneg %p265
        // Predicated region
        $region45: #{tpu_custom_call.1} parent=31 // pred_check
          _
        $region46: #{tpu_custom_call.1} parent=31 // pred_check_branch
          %268 = sbr.rel (%p265) target = $region48
        $region47: #{tpu_custom_call.1} parent=31 // pred_region
          %v269 = vld [vmem:[#allocation2] sm:$0xff]
          %v270 = vld [vmem:[#allocation2 + $0x8] sm:$0xff]
          %271 = vadd.xlane.f32.xlu0 %v269
          %v272 = vpop.xlane.xlu0 %271
          %273 = vadd.xlane.f32.xlu0 %v270
          %v274 = vpop.xlane.xlu0 %273
          %v275 = vmul.f32 %v272, 0.001953125
          %v276 = vmul.f32 %v274, 0.001953125
          %v277 = vld [vmem:[#allocation3] sm:$0xff]
          %v278 = vld [vmem:[#allocation3 + $0x8] sm:$0xff]
          %279 = vadd.xlane.f32.xlu0 %v277
          %v280 = vpop.xlane.xlu0 %279
          %281 = vadd.xlane.f32.xlu0 %v278
          %v282 = vpop.xlane.xlu0 %281
          %v283 = vmul.f32 %v280, 0.001953125
          %v284 = vmul.f32 %v282, 0.001953125
          %v285 = vmul.f32 %v275, %v275
          %v286 = vmul.f32 %v276, %v276
          %v287 = vsub.f32 %v283, %v285
          %v288 = vsub.f32 %v284, %v286
          %v289 = vmax.f32 %v287, 0.0
          %v290 = vmax.f32 %v288, 0.0
          %v291 = vadd.f32 %v289, 1e-05
          %v292 = vadd.f32 %v290, 1e-05
          %v293 = vrsqrt.pop %v291
          %v294 = vrsqrt.pop %v292
          %v295 = vld [vmem:[%s1] sm:$0xff]
          %v296 = vld [vmem:[%s1 + $0x8] sm:$0xff]
          %v297 = vmul.f32 %v295, %v293
          %v298 = vmul.f32 %v296, %v294
          %vm299 = vcmask 7168
          %300 = vst.msk [vmem:[#allocation4] sm:$0xff] %vm299, %v297
          %301 = vst.msk [vmem:[#allocation4 + $0x8] sm:$0xff] %vm299, %v298
          %v302 = vld [vmem:[%s2] sm:$0xff]
          %v303 = vld [vmem:[%s2 + $0x8] sm:$0xff]
          %v304 = vmul.f32 %v275, %v297
          %v305 = vmul.f32 %v276, %v298
          %v306 = vsub.f32 %v302, %v304
          %v307 = vsub.f32 %v303, %v305
          %308 = vst.msk [vmem:[#allocation5] sm:$0xff] %vm299, %v306
          %309 = vst.msk [vmem:[#allocation5 + $0x8] sm:$0xff] %vm299, %v307
        $region48: #{tpu_custom_call.1} parent=31 // pred_fallthru
          _
        %p310 = scmp.eq.s32.totalorder %s25, 1
        // Predicated region
        $region49: #{tpu_custom_call.1} parent=31 // pred_check
          %p311 = pneg %p310
        $region50: #{tpu_custom_call.1} parent=31 // pred_check_branch
          %313 = sbr.rel (%p311) target = $region52
        $region51: #{tpu_custom_call.1} parent=31 // pred_region
          %v314 = vld [vmem:[%s195] sm:$0xff]
          %v315 = vld [vmem:[%s195 + $0x8] sm:$0xff]
          %v316 = vld [vmem:[%s195 + $0x10] sm:$0xff]
          %v317 = vld [vmem:[%s195 + $0x18] sm:$0xff]
          %v318 = vld [vmem:[#allocation4] sm:$0xff]
          %v319 = vld [vmem:[#allocation4 + $0x8] sm:$0xff]
          %321 = vset.pattern.permute.xlu0 0
          %322 = vperm.xlu0 %321, %v318
          %v323 = vpop.permute.xlu0 %322
          %326 = vset.pattern.permute.xlu0 0
          %327 = vperm.xlu0 %326, %v319
          %v328 = vpop.permute.xlu0 %327
          %v330 = vmul.f32 %v314, %v323
          %v331 = vmul.f32 %v315, %v323
          %v332 = vmul.f32 %v316, %v328
          %v333 = vmul.f32 %v317, %v328
          %v334 = vld [vmem:[#allocation5] sm:$0xff]
          %v335 = vld [vmem:[#allocation5 + $0x8] sm:$0xff]
          %337 = vset.pattern.permute.xlu0 0
          %338 = vperm.xlu0 %337, %v334
          %v339 = vpop.permute.xlu0 %338
          %342 = vset.pattern.permute.xlu0 0
          %343 = vperm.xlu0 %342, %v335
          %v344 = vpop.permute.xlu0 %343
          %v346 = vadd.f32 %v330, %v339
          %v347 = vadd.f32 %v331, %v339
          %v348 = vadd.f32 %v332, %v344
          %v349 = vadd.f32 %v333, %v344
          %350 = vst [vmem:[%s217] sm:$0xff] %v346
          %351 = vst [vmem:[%s217 + $0x8] sm:$0xff] %v347
          %352 = vst [vmem:[%s217 + $0x10] sm:$0xff] %v348
          %353 = vst [vmem:[%s217 + $0x18] sm:$0xff] %v349
        $region52: #{tpu_custom_call.1} parent=31 // pred_fallthru
          _
        %s354 = sand.u32 %s123, 1
        %s355 = scalar_lea.sflag [#allocation8], %s354
        %s356 = sand.u32 %s123, 1
        %s357 = smul.addr %s356, 32
        %s358 = scalar_lea.vmem [#allocation9], %s357
        // Predicated region
        $region53: #{tpu_custom_call.1} parent=31 // pred_check
          %p359 = pneg %p133
        $region54: #{tpu_custom_call.1} parent=31 // pred_check_branch
          %361 = sbr.rel (%p359) target = $region56
        $region55: #{tpu_custom_call.1} parent=31 // pred_region
          %s362 = smul.u32 %s25, %s26
          %s363 = smul.u32 %s25, %s27
          %s364 = smul.u32 2, %s363
          %s366 = ssub.s32 512, 512
          %367 = vsyncadd %s355, %s366
          %s368 = smul.addr %s362, 4
          %s369 = sadd.s32 %s364, %s368
          %s370 = smul.addr %s369, 128
          %s371 = scalar_lea.hbm %s3, %s370
          %s372 = sshll.u32 %s358, 4
          %s373 = int_to_ptr.vmem [resolvable:$true] %s372
          %378 = dma.vmem_to_hbm [thread:$0]  %s373, 512, %s371, %s355, 256, 256, 16
        $region56: #{tpu_custom_call.1} parent=31 // pred_fallthru
          _
      $region32: #{tpu_custom_call.1} parent=5 // pred_fallthru
        _
      %p379 = scmp.le.s32.totalorder 2, %s15
      // Predicated region
      $region57: #{tpu_custom_call.1} parent=5 // pred_check
        %p380 = pneg %p379
      $region58: #{tpu_custom_call.1} parent=5 // pred_check_branch
        %382 = sbr.rel (%p380) target = $region60
      $region59: #{tpu_custom_call.1} parent=5 // pred_region
        %s383 = ssub.s32 %s15, 2
        // Predicated region
        $region61: #{tpu_custom_call.1} parent=59 // pred_check
          %p384 = pneg %p139
        $region62: #{tpu_custom_call.1} parent=59 // pred_check_branch
          %386 = sbr.rel (%p384) target = $region64
        $region63: #{tpu_custom_call.1} parent=59 // pred_region
          %s387 = sand.u32 %s124, 1
          %s388 = scalar_lea.sflag [#allocation8], %s387
          %s389 = sand.u32 %s124, 1
          %s390 = smul.addr %s389, 32
          %s391 = scalar_lea.vmem [#allocation9], %s390
          %392 = dma.done %s388, 512
        $region64: #{tpu_custom_call.1} parent=59 // pred_fallthru
          _
      $region60: #{tpu_custom_call.1} parent=5 // pred_fallthru
        _
    $region6: #{tpu_custom_call.1} parent=1 // loop_footer
      %s19 = sadd.s32 1, %s15
    $region7: #{tpu_custom_call.1} parent=1 // loop_footer_branch
      %14 = sbr.rel target = $region3
    $region8: #{tpu_custom_call.1} parent=1 // loop_exit
      _
    %393 = vsyncpa [#allocation7], 1
    %s394 = scalar_lea.sflag [#allocation7], 1
    %395 = vsyncpa %s394, 1
    %396 = vsyncpa [#allocation8], 1
    %s397 = scalar_lea.sflag [#allocation8], 1
    %398 = vsyncpa %s397, 1

</llo_original>
